<compile_context>
chip_gen: v7x
topology: tpu7x:2x2x1
jax: 0.10.0
libtpu: 0.0.40
codegen_flags: <defaults>
</compile_context>

<pallas_src>
import functools

import jax
import jax.numpy as jnp
from jax import lax
from jax.experimental import pallas as pl
from jax.experimental.pallas import tpu as pltpu

# ---- model dimensions (implied by the PyTorch module) -----------------------
B = 2
C_IN, H_IN, W_IN = 3, 224, 224
C_OUT, K = 8, 5
H_CONV, W_CONV = H_IN - K + 1, W_IN - K + 1          # 220, 220
H_POOL, W_POOL = H_CONV // 2, W_CONV // 2            # 110, 110
H_HALF, W_HALF = H_IN // 2, W_IN // 2                # 112, 112
FLAT = C_OUT * H_POOL * W_POOL                       # 96800
HID = 256
N_CLS, N_BOX = 2, 4

# ---- conv kernel tiling ------------------------------------------------------
W_LANE = 128                    # lane-dense padded width (112 -> 128)
RT = 16                         # pooled rows produced per grid step
N_RT = 112 // RT                # 7 row tiles (output H padded 110 -> 112)
H_OUT_PAD = RT * N_RT           # 112
N_PHASE_CH = 4 * C_IN           # 12 pool-phase x input-channel planes
N_QH = 3                        # pre-shifted H copies (qh in {0,1,2})
N_PLANES = N_QH * N_PHASE_CH    # 36

# ---- fc1 tiling --------------------------------------------------------------
TK = 19456                      # reduction tile (= 152*128); bf16 block = 9.5 MiB
NK = 5
FLAT_PAD = NK * TK              # 97280 (only 480 dead rows)
HEAD_PAD = 128                  # fused class(2)+bbox(4) head, lane-dense


# ---- roll-direction probe (one-time, convention-proof pltpu.roll use) --------
def _roll_matches_jnp():
    """True iff pltpu.roll(x, s, axis) == jnp.roll(x, s, axis)."""
    def kern(x_ref, o_ref):
        o_ref[...] = pltpu.roll(x_ref[...], 1, 1)

    x = jnp.tile(jnp.arange(W_LANE, dtype=jnp.float32)[None, :], (8, 1))
    y = pl.pallas_call(
        kern, out_shape=jax.ShapeDtypeStruct((8, W_LANE), jnp.float32))(x)
    return bool(jnp.allclose(y, jnp.roll(x, 1, axis=1)))


# ---- kernel 1: Conv2d + ReLU + MaxPool2d ------------------------------------
def conv_relu_pool_kernel(x_ref, w_ref, b_ref, o_ref, *, roll_like_jnp):
    # x_ref: (1, 36, RT, 128) VMEM f32, plane = qh*12 + (ph*2+pw)*3 + c
    #        (H pre-shifted by qh so every read is a full aligned block)
    # w_ref: (600,) SMEM f32, flat index of (oc, c, kh, kw)
    # b_ref: (8,)   SMEM f32
    # o_ref: (1, 8, RT, 128) VMEM bf16 -- RT pooled rows of all 8 out channels
    pooled = [None] * C_OUT
    for di in range(2):                    # pooling phase along H
        for dj in range(2):                # pooling phase along W
            acc = [jnp.zeros((RT, W_LANE), jnp.float32) for _ in range(C_OUT)]
            for kh in range(K):
                ph, qh = (di + kh) % 2, (di + kh) // 2
                for kw in range(K):
                    pw, s = (dj + kw) % 2, (dj + kw) // 2
                    for c in range(C_IN):
                        chan = qh * N_PHASE_CH + (ph * 2 + pw) * C_IN + c
                        sl = x_ref[0, chan, :, :]              # aligned (RT,128)
                        if s:
                            # want sl'[j] = sl[j + s]; XLU lane rotation
                            shift = (W_LANE - s) if roll_like_jnp else s
                            sl = pltpu.roll(sl, shift, 1)
                        # one shifted slice reused by all 8 output channels
                        for oc in range(C_OUT):
                            w = w_ref[((oc * C_IN + c) * K + kh) * K + kw]
                            acc[oc] = acc[oc] + w * sl
            for oc in range(C_OUT):
                pooled[oc] = acc[oc] if pooled[oc] is None \
                    else jnp.maximum(pooled[oc], acc[oc])
    # bias + ReLU commute with the max over pool phases (ReLU monotone, bias shared)
    for oc in range(C_OUT):
        o_ref[0, oc, :, :] = jnp.maximum(pooled[oc] + b_ref[oc], 0.0
                                         ).astype(o_ref.dtype)


def conv_relu_pool(x, w_flat, conv_b, roll_like_jnp):
    # glue: split NCHW input into the 4 pooling phases, pad W to 128 lanes and
    # H by the +2 halo, then build 3 H-shifted copies so every in-kernel tap
    # read is a full sublane-aligned block (W shifts are in-kernel rolls).
    xp = (x.reshape(B, C_IN, H_HALF, 2, W_HALF, 2)
           .transpose(0, 3, 5, 1, 2, 4)
           .reshape(B, N_PHASE_CH, H_HALF, W_HALF))
    xp = jnp.pad(xp, ((0, 0), (0, 0), (0, 2), (0, W_LANE - W_HALF)))
    xs = jnp.stack([xp[:, :, qh:qh + H_OUT_PAD, :] for qh in range(N_QH)], axis=1)
    xs = xs.reshape(B, N_PLANES, H_OUT_PAD, W_LANE)

    kern = functools.partial(conv_relu_pool_kernel, roll_like_jnp=roll_like_jnp)
    return pl.pallas_call(
        kern,
        out_shape=jax.ShapeDtypeStruct((B, C_OUT, H_OUT_PAD, W_LANE),
                                       jnp.bfloat16),
        grid_spec=pltpu.PrefetchScalarGridSpec(
            num_scalar_prefetch=0,
            grid=(B, N_RT),
            in_specs=[
                pl.BlockSpec((1, N_PLANES, RT, W_LANE),
                             lambda b, r: (b, 0, r, 0)),
                pl.BlockSpec(memory_space=pltpu.MemorySpace.SMEM),
                pl.BlockSpec(memory_space=pltpu.MemorySpace.SMEM),
            ],
            out_specs=pl.BlockSpec((1, C_OUT, RT, W_LANE),
                                   lambda b, r: (b, 0, r, 0)),
        ),
        compiler_params=pltpu.CompilerParams(
            dimension_semantics=("parallel", "parallel")),
    )(xs, w_flat, conv_b)


# ---- kernel 2: fc1 (contiguous bf16 K-tiles) + ReLU + fused heads ------------
def fc_heads_kernel(feat_ref, w1_ref, b1_ref, hw_ref, out_ref, acc_ref):
    k = pl.program_id(0)

    @pl.when(k == 0)
    def _():
        acc_ref[...] = jnp.zeros_like(acc_ref)

    # bf16 x bf16 on the MXU, f32 accumulation
    acc_ref[...] += jnp.dot(feat_ref[...], w1_ref[...],
                            preferred_element_type=jnp.float32)

    @pl.when(k == pl.num_programs(0) - 1)
    def _():
        hid = jnp.maximum(acc_ref[...] + b1_ref[...], 0.0)          # ReLU(fc1)
        out_ref[...] = jnp.dot(hid, hw_ref[...],
                               preferred_element_type=jnp.float32)


def fc_heads(feat, w1_p, b1_2d, heads_w, b2c, b2b):
    # feat is small (B x 96800 bf16); padding 480 cols per call is cheap.
    feat_p = jnp.pad(feat, ((0, 0), (0, FLAT_PAD - FLAT)))

    head = pl.pallas_call(
        fc_heads_kernel,
        out_shape=jax.ShapeDtypeStruct((B, HEAD_PAD), jnp.float32),
        grid_spec=pltpu.PrefetchScalarGridSpec(
            num_scalar_prefetch=0,
            grid=(NK,),
            in_specs=[
                pl.BlockSpec((B, TK), lambda k: (0, k)),
                # contiguous (TK, 256) slabs of the row-major weight,
                # triple-buffered to keep the HBM stream gap-free
                pl.BlockSpec((TK, HID), lambda k: (k, 0),
                             pipeline_mode=pl.Buffered(3)),
                pl.BlockSpec((1, HID), lambda k: (0, 0)),
                pl.BlockSpec((HID, HEAD_PAD), lambda k: (0, 0)),
            ],
            out_specs=pl.BlockSpec((B, HEAD_PAD), lambda k: (0, 0)),
            scratch_shapes=[pltpu.VMEM((B, HID), jnp.float32)],
        ),
        compiler_params=pltpu.CompilerParams(
            dimension_semantics=("arbitrary",),
            vmem_limit_bytes=40 * 1024 * 1024),
    )(feat_p, w1_p, b1_2d, heads_w)

    cls = head[:, :N_CLS] + b2c
    box = jnp.maximum(head[:, N_CLS:N_CLS + N_BOX] + b2b, 0.0)
    return cls, box


# ---- one-time parameter preparation (outside the jitted forward) -------------
def prepare_params(p):
    # pad + cast the 96800x256 fc1 weight ONCE; row-major (FLAT_PAD, 256) so
    # every (TK, 256) block streamed by the fc kernel is contiguous in HBM.
    w1_p = jnp.pad(p["w1"], ((0, FLAT_PAD - FLAT), (0, 0))).astype(jnp.bfloat16)
    heads_w = jnp.zeros((HID, HEAD_PAD), jnp.float32)
    heads_w = heads_w.at[:, :N_CLS].set(p["w2c"])
    heads_w = heads_w.at[:, N_CLS:N_CLS + N_BOX].set(p["w2b"])
    return {
        "conv_w_flat": p["conv_w"].reshape(-1),      # (600,) flat (oc,c,kh,kw)
        "conv_b": p["conv_b"],
        "w1_p": w1_p,                                # (97280, 256) bf16
        "b1": p["b1"].reshape(1, HID),
        "heads_w": heads_w,                          # (256, 128) f32, lane-dense
        "b2c": p["b2c"],
        "b2b": p["b2b"],
    }


# ---- full forward ------------------------------------------------------------
def neural_network_forward(x, p, *, roll_like_jnp=True):
    conv_out = conv_relu_pool(x, p["conv_w_flat"], p["conv_b"],
                              roll_like_jnp)                     # (B,8,112,128) bf16
    feat = conv_out[:, :, :H_POOL, :W_POOL].reshape(B, FLAT)     # PyTorch flatten order
    cls, box = fc_heads(feat, p["w1_p"], p["b1"], p["heads_w"],
                        p["b2c"], p["b2b"])
    return cls, box.reshape(-1, N_BOX)


# ---- pure-JAX reference (numerical sanity check) ------------------------------
def reference_forward(x, p):
    conv = lax.conv_general_dilated(
        x, p["conv_w"], window_strides=(1, 1), padding="VALID",
        dimension_numbers=("NCHW", "OIHW", "NCHW"),
        precision=lax.Precision.HIGHEST)
    conv = conv + p["conv_b"][None, :, None, None]
    act = jnp.maximum(conv, 0.0)
    pool = lax.reduce_window(act, -jnp.inf, lax.max,
                             (1, 1, 2, 2), (1, 1, 2, 2), "VALID")
    feat = pool.reshape(B, -1)
    hid = jnp.maximum(
        jnp.dot(feat, p["w1"], precision=lax.Precision.HIGHEST) + p["b1"], 0.0)
    cls = jnp.dot(hid, p["w2c"], precision=lax.Precision.HIGHEST) + p["b2c"]
    box = jnp.maximum(
        jnp.dot(hid, p["w2b"], precision=lax.Precision.HIGHEST) + p["b2b"], 0.0)
    return cls, box.reshape(-1, N_BOX)


if __name__ == "__main__":
    key = jax.random.PRNGKey(0)
    ks = jax.random.split(key, 9)
    x = jax.random.normal(ks[0], (B, C_IN, H_IN, W_IN), jnp.float32)
    params = {
        "conv_w": jax.random.normal(ks[1], (C_OUT, C_IN, K, K), jnp.float32)
                  * (1.0 / (C_IN * K * K) ** 0.5),
        "conv_b": jax.random.normal(ks[2], (C_OUT,), jnp.float32) * 0.1,
        "w1": jax.random.normal(ks[3], (FLAT, HID), jnp.float32) * (1.0 / FLAT ** 0.5),
        "b1": jax.random.normal(ks[4], (HID,), jnp.float32) * 0.1,
        "w2c": jax.random.normal(ks[5], (HID, N_CLS), jnp.float32) * (1.0 / HID ** 0.5),
        "b2c": jax.random.normal(ks[6], (N_CLS,), jnp.float32) * 0.1,
        "w2b": jax.random.normal(ks[7], (HID, N_BOX), jnp.float32) * (1.0 / HID ** 0.5),
        "b2b": jax.random.normal(ks[8], (N_BOX,), jnp.float32) * 0.1,
    }

    prep = prepare_params(params)              # one-time pad/cast/fuse of weights
    jax.block_until_ready(prep)

    roll_like_jnp = _roll_matches_jnp()        # one-time roll-convention probe

    fwd = jax.jit(functools.partial(neural_network_forward,
                                    roll_like_jnp=roll_like_jnp))
    cls, box = fwd(x, prep)
    jax.block_until_ready((cls, box))

    assert cls.shape == (B, N_CLS) and cls.dtype == jnp.float32
    assert box.shape == (B, N_BOX) and box.dtype == jnp.float32

    ref_cls, ref_box = reference_forward(x, params)
    assert jnp.allclose(cls, ref_cls, atol=2e-2, rtol=2e-2), "class head mismatch"
    assert jnp.allclose(box, ref_box, atol=2e-2, rtol=2e-2), "bbox head mismatch"

    print("KERNEL_OK")
</pallas_src>

<mosaic_0001>
module attributes {stable_mosaic.version = 11 : i64} {
  func.func @kern(%arg0: memref<8x128xf32, #tpu.memory_space<vmem>>, %arg1: memref<8x128xf32, #tpu.memory_space<vmem>>) attributes {dimension_semantics = [], scalar_prefetch = 0 : i64, scratch_operands = 0 : i64, tpu.core_type = #tpu.core_type<tc>} {
    %c0 = arith.constant 0 : index
    %c0_0 = arith.constant 0 : index
    %0 = vector.load %arg0[%c0, %c0_0] : memref<8x128xf32, #tpu.memory_space<vmem>>, vector<8x128xf32>
    %c1_i32 = arith.constant 1 : i32
    %1 = tpu.dynamic_rotate %0 by %c1_i32 dim 1 : vector<8x128xf32>, i32 -> vector<8x128xf32>
    %c0_1 = arith.constant 0 : index
    %c0_2 = arith.constant 0 : index
    %2 = vector.load %arg1[%c0_1, %c0_2] : memref<8x128xf32, #tpu.memory_space<vmem>>, vector<8x128xf32>
    tpu.vector_store %arg1[%c0_1, %c0_2], %1 {strides = array<i32>} : memref<8x128xf32, #tpu.memory_space<vmem>>, vector<8x128xf32>,
    return
  }
}

</mosaic_0001>

<llo_original>
// kernel: tpu_custom_call.1
$region0: #{tpu_custom_call.1}
  #allocation0 [shape = 'u32[]', space=smem, size = 0x4, offset = 0x4, fixed_abs, tag = 'smem constant byte address 0x4 - core index']
  #allocation1 [shape = 'u32[144,128]{1,0:T(1,128)}', space=vmem, size = 0x12000, scoped, tag = 'internal scratch']
  %s0 = inlined_call_operand.hbm [shape: f32[8,128], index: 0, kind: input, shape index: {}]
  %s1 = inlined_call_operand.hbm [shape: f32[8,128], index: 1, kind: output, shape index: {}]
  %s2 = sld [smem:[#allocation0]]
  $region18: #{tpu_custom_call.1} parent=0
    _
  %s4 = ssub.s32 1, %s2
  %s5 = scalar_select 0, %s4, %s2
  $region1: #{tpu_custom_call.1} parent=0
    #allocation2 [shape = 'u8[4096]{0}', space=vmem, size = 0x1000, scoped, tag = 'input window, operand 0, single buffered']
    #allocation3 [shape = 's32[1]{0}', space=sflag, size = 0x4, scoped, tag = 'scoped memory for tpu_custom_call.1']
    #allocation4 [shape = 's32[1]{0}', space=sflag, size = 0x4, scoped, tag = 'scoped memory for tpu_custom_call.1']
    #allocation5 [shape = 'u8[4096]{0}', space=vmem, size = 0x1000, scoped, tag = 'output window, operand 0, single buffered']
    %6 = vsyncpa [#allocation3], 0
    %7 = vsyncpa [#allocation4], 0
    // Predicated region
    $region2: #{tpu_custom_call.1} parent=1 // pred_check
      _
    $region3: #{tpu_custom_call.1} parent=1 // pred_check_branch
      %9 = sbr.rel (0) target = $region5
    $region4: #{tpu_custom_call.1} parent=1 // pred_region
      %s11 = ssub.s32 128, 128
      %12 = vsyncadd [#allocation3], %s11
      %s14 = sshll.u32 [#allocation2], 4
      %s15 = int_to_ptr.vmem [resolvable:$true] %s14
      %17 = dma.hbm_to_vmem [thread:$0]  %s0, 128, %s15, [#allocation3]
    $region5: #{tpu_custom_call.1} parent=1 // pred_fallthru
      _
    // Predicated region
    $region6: #{tpu_custom_call.1} parent=1 // pred_check
      _
    $region7: #{tpu_custom_call.1} parent=1 // pred_check_branch
      %19 = sbr.rel (0) target = $region9
    $region8: #{tpu_custom_call.1} parent=1 // pred_region
      %20 = dma.done [#allocation3], 128
    $region9: #{tpu_custom_call.1} parent=1 // pred_fallthru
      _
    %v21 = vld [vmem:[#allocation2] sm:$0xff]
    %22 = vrot.lane.b32.xlu0 %v21, 1
    %v23 = vpop.permute.xlu0 %22
    %24 = vst [vmem:[#allocation5] sm:$0xff] %v23
    // Predicated region
    $region10: #{tpu_custom_call.1} parent=1 // pred_check
      _
    $region11: #{tpu_custom_call.1} parent=1 // pred_check_branch
      %26 = sbr.rel (0) target = $region13
    $region12: #{tpu_custom_call.1} parent=1 // pred_region
      %s28 = ssub.s32 128, 128
      %29 = vsyncadd [#allocation4], %s28
      %s31 = sshll.u32 [#allocation5], 4
      %s32 = int_to_ptr.vmem [resolvable:$true] %s31
      %34 = dma.vmem_to_hbm [thread:$0]  %s32, 128, %s1, [#allocation4]
    $region13: #{tpu_custom_call.1} parent=1 // pred_fallthru
      _
    // Predicated region
    $region14: #{tpu_custom_call.1} parent=1 // pred_check
      _
    $region15: #{tpu_custom_call.1} parent=1 // pred_check_branch
      %36 = sbr.rel (0) target = $region17
    $region16: #{tpu_custom_call.1} parent=1 // pred_region
      %37 = dma.done [#allocation4], 128
    $region17: #{tpu_custom_call.1} parent=1 // pred_fallthru
      _
    %38 = vsyncpa [#allocation3], 1
    %39 = vsyncpa [#allocation4], 1

</llo_original>
